<compile_context>
chip_gen: v5e
topology: v5e:2x2
jax: 0.10.0
libtpu: 0.0.40
codegen_flags: <defaults>
</compile_context>

<pallas_src>
import functools
import math

import jax
import jax.numpy as jnp
from jax.experimental import pallas as pl
from jax.experimental.pallas import tpu as pltpu


def _round_up(x, m):
    return ((x + m - 1) // m) * m


_VMEM_LIMIT = 32 * 1024 * 1024


# --------------------------- Pallas kernels ---------------------------------

def _char_conv_pool_kernel(x_ref, w_ref, mb_ref, o_ref, *, n_pos, f_pad):
    """Toeplitz-expanded char conv + max pool over conv positions.

    x_ref : [TILE_N, Lc_pad*cd]        flattened char embeddings
    w_ref : [Lc_pad*cd, n_pos*F_pad]   Toeplitz-expanded filter bank
    mb_ref: [n_pos, F_pad]             bias + (-1e30 where (pos, filter) invalid)
    o_ref : [TILE_N, F_pad]
    """
    prod = jnp.dot(x_ref[...], w_ref[...], preferred_element_type=jnp.float32)
    best = prod[:, 0:f_pad] + mb_ref[0:1, :]
    for p in range(1, n_pos):
        best = jnp.maximum(best,
                           prod[:, p * f_pad:(p + 1) * f_pad] + mb_ref[p:p + 1, :])
    o_ref[...] = best


def char_conv_pool(x_flat, w_toep, mask_bias, *, tile_n=256):
    """x_flat: [N, Lc_pad*cd], w_toep: [Lc_pad*cd, n_pos*F_pad]."""
    N, LK = x_flat.shape
    n_pos, F_pad = mask_bias.shape
    NP = w_toep.shape[1]
    tn = min(tile_n, _round_up(N, 8))
    Np = _round_up(N, tn)
    if Np != N:
        x_flat = jnp.pad(x_flat, ((0, Np - N), (0, 0)))
    out = pl.pallas_call(
        functools.partial(_char_conv_pool_kernel, n_pos=n_pos, f_pad=F_pad),
        out_shape=jax.ShapeDtypeStruct((Np, F_pad), jnp.float32),
        grid=(Np // tn,),
        in_specs=[
            pl.BlockSpec((tn, LK), lambda i: (i, 0)),
            pl.BlockSpec((LK, NP), lambda i: (0, 0)),
            pl.BlockSpec((n_pos, F_pad), lambda i: (0, 0)),
        ],
        out_specs=pl.BlockSpec((tn, F_pad), lambda i: (i, 0)),
        compiler_params=pltpu.CompilerParams(
            dimension_semantics=("parallel",),
            vmem_limit_bytes=_VMEM_LIMIT),
    )(x_flat, w_toep, mask_bias)
    return out[:N] if Np != N else out


def _linear_kernel(x_ref, w_ref, b_ref, o_ref, *, apply_tanh):
    x = x_ref[...]
    if apply_tanh:
        x = jnp.tanh(x)
    o_ref[...] = (jnp.dot(x, w_ref[...], preferred_element_type=jnp.float32)
                  + b_ref[...])


def pallas_linear(x, w, b, apply_tanh=False, tile_m=512):
    """x: [M, K], w: [K, N], b: [1, N] -> [M, N]  (optionally tanh(x) first)."""
    M, K = x.shape
    N = w.shape[1]
    tm = min(tile_m, _round_up(M, 8))
    Mp = _round_up(M, tm)
    if Mp != M:
        x = jnp.pad(x, ((0, Mp - M), (0, 0)))
    out = pl.pallas_call(
        functools.partial(_linear_kernel, apply_tanh=apply_tanh),
        out_shape=jax.ShapeDtypeStruct((Mp, N), jnp.float32),
        grid=(Mp // tm,),
        in_specs=[
            pl.BlockSpec((tm, K), lambda i: (i, 0)),
            pl.BlockSpec((K, N), lambda i: (0, 0)),
            pl.BlockSpec((1, N), lambda i: (0, 0)),
        ],
        out_specs=pl.BlockSpec((tm, N), lambda i: (i, 0)),
        compiler_params=pltpu.CompilerParams(
            dimension_semantics=("parallel",),
            vmem_limit_bytes=_VMEM_LIMIT),
    )(x, w, b)
    return out[:M] if Mp != M else out


def _bilstm_rec_kernel(xp_ref, whh_ref, o_ref, h_sc, c_sc, *, unroll):
    """Fused fwd+bwd LSTM recurrence (PyTorch gate order i,f,g,o).

    Backward-direction time reversal is pre-packed into xp by the wrapper, so
    each step issues a single [B,8H] load, one [B,2H]x[2H,8H] matmul, ONE tanh
    over the full gate width (sigmoid lanes are pre-scaled by 0.5 in the packed
    weights: sigmoid(x) = 0.5 + 0.5*tanh(0.5*x)), and a single lane-dense
    [B,2H] store of the fused [fwd|bwd] hidden state.

    xp_ref : [Tc, B, 8H]  x @ W_ih_pack + bias_pack (gate-major, fwd|bwd halves,
                          sigmoid lanes pre-scaled, bwd lanes time-reversed)
    whh_ref: [2H, 8H]     block-diagonal packed recurrent weights (pre-scaled)
    o_ref  : [Tc, B, 2H]  fused hidden states (bwd half time-reversed)
    h_sc/c_sc: [B, 2H]    fused [fwd | bwd] state, carried across time chunks
    """
    Tc = xp_ref.shape[0]
    B, H2 = h_sc.shape
    G = xp_ref.shape[2]                      # 8H

    @pl.when(pl.program_id(1) == 0)          # first time chunk: reset state
    def _():
        h_sc[...] = jnp.zeros_like(h_sc)
        c_sc[...] = jnp.zeros_like(c_sc)

    lane = jax.lax.broadcasted_iota(jnp.int32, (B, G), 1)
    is_tanh = (lane // H2) == 2              # gate 2 (g) uses tanh
    a_const = jnp.where(is_tanh, 1.0, 0.5).astype(jnp.float32)
    b_const = jnp.where(is_tanh, 0.0, 0.5).astype(jnp.float32)

    def step(t, carry):
        gates = xp_ref[t] + jnp.dot(h_sc[...], whh_ref[...],
                                    preferred_element_type=jnp.float32)
        act = a_const * jnp.tanh(gates) + b_const
        i_g = act[:, 0 * H2:1 * H2]
        f_g = act[:, 1 * H2:2 * H2]
        g_g = act[:, 2 * H2:3 * H2]
        o_g = act[:, 3 * H2:4 * H2]
        c_new = f_g * c_sc[...] + i_g * g_g
        h_new = o_g * jnp.tanh(c_new)
        c_sc[...] = c_new
        h_sc[...] = h_new
        o_ref[t] = h_new
        return carry

    jax.lax.fori_loop(0, Tc, step, 0, unroll=unroll)


def bilstm_recurrence(xp_packed, whh_pack, *, t_block=32):
    """xp_packed: [T, B, 8H] with bwd gate lanes already time-reversed.

    Returns h_cat [T, B, 2H]: columns [:H] are fwd states in sequence order,
    columns [H:] are bwd states in REVERSED time order (flipped by the caller).
    """
    T, B, G = xp_packed.shape
    H = G // 8
    H2 = 2 * H

    # >=2 batch blocks when the batch is large enough so the serial recurrence
    # shards across v7x's two TensorCores ("parallel" axis); no-op on 1-TC chips.
    bt = B if B <= 8 else _round_up((B + 1) // 2, 8)
    Bp = _round_up(B, bt)
    # time chunking bounds VMEM (full-T residency of xp would exceed v7x's
    # 64 MiB for realistic T/B/H); padded time steps run after all real ones.
    tc = min(T, t_block)
    Tp = _round_up(T, tc)
    if (Tp, Bp) != (T, B):
        xp_packed = jnp.pad(xp_packed, ((0, Tp - T), (0, Bp - B), (0, 0)))

    unroll = True if tc <= 32 else 4
    out = pl.pallas_call(
        functools.partial(_bilstm_rec_kernel, unroll=unroll),
        out_shape=jax.ShapeDtypeStruct((Tp, Bp, H2), jnp.float32),
        grid=(Bp // bt, Tp // tc),
        in_specs=[
            pl.BlockSpec((tc, bt, G), lambda b, t: (t, b, 0)),
            pl.BlockSpec((H2, G), lambda b, t: (0, 0)),
        ],
        out_specs=pl.BlockSpec((tc, bt, H2), lambda b, t: (t, b, 0)),
        scratch_shapes=[
            pltpu.VMEM((bt, H2), jnp.float32),
            pltpu.VMEM((bt, H2), jnp.float32),
        ],
        compiler_params=pltpu.CompilerParams(
            dimension_semantics=("parallel", "arbitrary"),
            vmem_limit_bytes=_VMEM_LIMIT),
    )(xp_packed, whh_pack)
    return out[:T, :B]


# --------------------------- parameter packing helpers -----------------------

def _xavier_uniform(key, shape, fan_in, fan_out):
    bound = math.sqrt(6.0 / (fan_in + fan_out))
    return jax.random.uniform(key, shape, jnp.float32, -bound, bound)


def _pack_gate_cols(mat_f, mat_b, H):
    """mat_f, mat_b: [4H, X] -> [X, 8H] columns grouped per gate as [fwd|bwd]."""
    cols = []
    for g in range(4):
        cols.append(mat_f[g * H:(g + 1) * H, :].T)
        cols.append(mat_b[g * H:(g + 1) * H, :].T)
    return jnp.concatenate(cols, axis=1)


def _pack_whh(w_hh_f, w_hh_b, H):
    """Block-diagonal packed recurrent weights: [2H, 8H]."""
    whh = jnp.zeros((2 * H, 8 * H), jnp.float32)
    for g in range(4):
        whh = whh.at[0:H, g * 2 * H:g * 2 * H + H].set(
            w_hh_f[g * H:(g + 1) * H, :].T)
        whh = whh.at[H:2 * H, g * 2 * H + H:(g + 1) * 2 * H].set(
            w_hh_b[g * H:(g + 1) * H, :].T)
    return whh


def _gate_col_scale(H):
    """0.5 on sigmoid-gate lanes (i,f,o), 1.0 on tanh-gate lanes (g)."""
    gate = jnp.arange(8 * H, dtype=jnp.int32) // (2 * H)
    return jnp.where(gate == 2, 1.0, 0.5).astype(jnp.float32)


# --------------------------- model (params + glue) --------------------------

class BiLSTM_CNN_Pallas:
    def __init__(self, key, *, embed_num, embed_dim, label_num, paddingId,
                 char_paddingId, char_embed_num, char_dim, conv_filter_sizes,
                 conv_filter_nums, lstm_hiddens, lstm_layers=1, **unused):
        self.embed_dim = embed_dim
        self.char_dim = char_dim
        self.conv_filter_sizes = list(conv_filter_sizes)
        self.conv_filter_nums = list(conv_filter_nums)
        self.lstm_hiddens = lstm_hiddens
        self.lstm_layers = lstm_layers
        self.label_num = label_num

        keys = iter(jax.random.split(key, 64))

        # word embedding (padding row zeroed, as nn.Embedding does at init)
        w = jax.random.normal(next(keys), (embed_num, embed_dim), jnp.float32)
        self.embed_w = w.at[paddingId].set(0.0)
        # char embedding (xavier init; forward is a plain gather)
        self.char_embed_w = _xavier_uniform(
            next(keys), (char_embed_num, char_dim), char_embed_num, char_dim)

        # ---- char conv filter bank (Toeplitz-expanded lazily per Lc) ---------
        self.min_fs = min(self.conv_filter_sizes)
        self.max_fs = max(self.conv_filter_sizes)
        self.F_total = sum(self.conv_filter_nums)
        self.F_pad = _round_up(self.F_total, 128)      # lane-dense output
        Kmax = self.max_fs * char_dim
        w_comb = jnp.zeros((Kmax, self.F_pad), jnp.float32)
        bias_vec = jnp.zeros((self.F_pad,), jnp.float32)
        col_fs = jnp.zeros((self.F_pad,), jnp.int32)
        off = 0
        for fs, F in zip(self.conv_filter_sizes, self.conv_filter_nums):
            fan_in = fs * char_dim
            cw = _xavier_uniform(next(keys), (F, fs, char_dim), fan_in, F)
            cb = jax.random.uniform(next(keys), (F,), jnp.float32, -0.1, 0.1)
            w_comb = w_comb.at[:fs * char_dim, off:off + F].set(
                cw.reshape(F, fs * char_dim).T)
            bias_vec = bias_vec.at[off:off + F].set(cb)
            col_fs = col_fs.at[off:off + F].set(fs)
            off += F
        self.conv_w_comb = w_comb        # [Kmax, F_pad]
        self.conv_bias_vec = bias_vec    # [F_pad]
        self.conv_col_fs = col_fs        # [F_pad] (0 for pad columns)
        self._toep_cache = {}            # Lc -> (w_toep, mask_bias, n_pos, lc_pad)

        # ---- fused-direction BiLSTM parameters --------------------------------
        H = lstm_hiddens
        lstm_in = embed_dim + self.F_total
        col_scale = _gate_col_scale(H)   # 0.5 on sigmoid lanes for 1-tanh gating
        # fwd-lane mask over the 8H packed gate lanes (for xp time-reversal pack)
        self._fwd_lane = (jnp.arange(8 * H) % (2 * H)) < H
        self.lstm_params = []
        for layer in range(lstm_layers):
            in_dim = lstm_in if layer == 0 else 2 * H
            k = 1.0 / math.sqrt(H)

            def u(shape):
                return jax.random.uniform(next(keys), shape, jnp.float32, -k, k)

            w_ih_f, w_hh_f = u((4 * H, in_dim)), u((4 * H, H))
            b_f = u((4 * H,)) + u((4 * H,))              # b_ih + b_hh (fwd)
            w_ih_b, w_hh_b = u((4 * H, in_dim)), u((4 * H, H))
            b_b = u((4 * H,)) + u((4 * H,))              # b_ih + b_hh (bwd)

            self.lstm_params.append(dict(
                w_ih_pack=_pack_gate_cols(w_ih_f, w_ih_b, H)
                * col_scale[None, :],                                  # [I, 8H]
                bias_pack=_pack_gate_cols(b_f.reshape(4 * H, 1),
                                          b_b.reshape(4 * H, 1), H)
                * col_scale[None, :],                                  # [1, 8H]
                w_hh_pack=_pack_whh(w_hh_f, w_hh_b, H)
                * col_scale[None, :],                                  # [2H, 8H]
            ))

        # ---- output linear (tanh fused in kernel, padded to 128 lanes) --------
        C = label_num
        self.C_pad = _round_up(C, 128)
        lw = _xavier_uniform(next(keys), (C, 2 * H), 2 * H, C)        # [C, 2H]
        scope = math.sqrt(6.0 / (C + 1))
        lb = jax.random.uniform(next(keys), (C,), jnp.float32, -scope, scope)
        self.linear_w_pad = jnp.zeros((2 * H, self.C_pad),
                                      jnp.float32).at[:, :C].set(lw.T)
        self.linear_b_pad = jnp.zeros((1, self.C_pad),
                                      jnp.float32).at[0, :C].set(lb)

    # ----- Toeplitz-expanded conv bank (built once per char length) -----------
    def _conv_bank(self, Lc):
        if Lc in self._toep_cache:
            return self._toep_cache[Lc]
        # like the PyTorch reference, every filter size must fit the char axis
        assert Lc >= self.max_fs, "max_len_char shorter than largest filter"
        cd = self.char_dim
        n_pos = Lc - self.min_fs + 1
        lc_pad = n_pos + self.max_fs - 1
        Kmax = self.max_fs * cd
        w_toep = jnp.zeros((lc_pad * cd, n_pos * self.F_pad), jnp.float32)
        for p in range(n_pos):
            w_toep = w_toep.at[p * cd:p * cd + Kmax,
                               p * self.F_pad:(p + 1) * self.F_pad].set(
                self.conv_w_comb)
        # position p is valid for a filter of size fs iff p + fs <= Lc;
        # fold the conv bias into the validity mask (-1e30 masks the max).
        pos = jnp.arange(n_pos, dtype=jnp.int32)[:, None]
        valid = (pos + self.conv_col_fs[None, :]) <= Lc
        mask_bias = jnp.where(valid, self.conv_bias_vec[None, :], -1e30)
        self._toep_cache[Lc] = (w_toep, mask_bias, n_pos, lc_pad)
        return self._toep_cache[Lc]

    # ----- char CNN branch (time-major output) --------------------------------
    def _char_forward(self, char_ids):
        bs, T, Lc = char_ids.shape
        cd = self.char_dim
        w_toep, mask_bias, _, lc_pad = self._conv_bank(Lc)
        ids_tm = jnp.transpose(char_ids, (1, 0, 2)).reshape(-1)
        emb = self.char_embed_w[ids_tm].reshape(T * bs, Lc, cd)
        if lc_pad != Lc:
            emb = jnp.pad(emb, ((0, 0), (0, lc_pad - Lc), (0, 0)))
        x_flat = emb.reshape(T * bs, lc_pad * cd)
        out = char_conv_pool(x_flat, w_toep, mask_bias)       # [T*bs, F_pad]
        return out[:, :self.F_total].reshape(T, bs, self.F_total)

    # ----- full forward --------------------------------------------------------
    def forward(self, word, char, sentence_length):
        del sentence_length   # the reference forward ignores it (no packing)
        bs, T = word.shape
        H = self.lstm_hiddens

        char_tm = self._char_forward(char)                    # [T, bs, sumF]
        word_tm = self.embed_w[word.T]                        # [T, bs, D]
        x_tm = jnp.concatenate([word_tm, char_tm], axis=-1)   # [T, bs, I]
        # dropout_embed / dropout: identity (eval mode)

        B_pad = _round_up(bs, 8)          # fill the 8 sublanes of each vreg
        if B_pad != bs:
            x_tm = jnp.pad(x_tm, ((0, 0), (0, B_pad - bs), (0, 0)))

        for lp in self.lstm_params:
            in_dim = x_tm.shape[-1]
            xp = pallas_linear(x_tm.reshape(T * B_pad, in_dim),
                               lp["w_ih_pack"], lp["bias_pack"])   # [T*B, 8H]
            xp = xp.reshape(T, B_pad, 8 * H)
            # one-time wrapper-side pre-pack of the bwd time reversal
            xp_packed = jnp.where(self._fwd_lane, xp, xp[::-1])
            h_cat = bilstm_recurrence(xp_packed, lp["w_hh_pack"])  # [T, B, 2H]
            # fwd half already in sequence order; flip the bwd half once here
            x_tm = jnp.concatenate([h_cat[:, :, :H], h_cat[::-1, :, H:]],
                                   axis=-1)                        # [T, B, 2H]

        # dropout -> tanh -> linear (tanh + padded output fused in the kernel)
        logit = pallas_linear(x_tm.reshape(T * B_pad, 2 * H),
                              self.linear_w_pad, self.linear_b_pad,
                              apply_tanh=True)
        logit = logit.reshape(T, B_pad, self.C_pad)[:, :bs, :self.label_num]
        return jnp.transpose(logit, (1, 0, 2))                     # [bs, T, C]


# --------------------------- demo -------------------------------------------

if __name__ == "__main__":
    cfg = dict(embed_num=100, embed_dim=32, label_num=8, paddingId=0,
               char_paddingId=0, char_embed_num=60, char_dim=16,
               conv_filter_sizes=[2, 3], conv_filter_nums=[16, 16],
               lstm_hiddens=32, lstm_layers=1,
               dropout_emb=0.5, dropout=0.5, pretrained_embed=False,
               device="tpu")

    root = jax.random.PRNGKey(0)
    k_model, k_word, k_char = jax.random.split(root, 3)
    model = BiLSTM_CNN_Pallas(k_model, **cfg)

    bs, max_len, max_len_char = 2, 8, 8
    word = jax.random.randint(k_word, (bs, max_len), 0, cfg["embed_num"],
                              dtype=jnp.int32)
    char = jax.random.randint(k_char, (bs, max_len, max_len_char), 0,
                              cfg["char_embed_num"], dtype=jnp.int32)
    sentence_length = jnp.full((bs,), max_len, dtype=jnp.int32)

    logit = model.forward(word, char, sentence_length)
    jax.block_until_ready(logit)
    assert logit.shape == (bs, max_len, cfg["label_num"]), logit.shape
    assert logit.dtype == jnp.float32
    print("KERNEL_OK")
</pallas_src>

<mosaic_0001>
module attributes {stable_mosaic.version = 11 : i64} {
  func.func @_char_conv_pool_kernel(%arg0: i32, %arg1: memref<16x144xf32, #tpu.memory_space<vmem>>, %arg2: memref<144x896xf32, #tpu.memory_space<vmem>>, %arg3: memref<7x128xf32, #tpu.memory_space<vmem>>, %arg4: memref<16x128xf32, #tpu.memory_space<vmem>>) attributes {dimension_semantics = [#tpu.dimension_semantics<parallel>], iteration_bounds = array<i64: 1>, scalar_prefetch = 0 : i64, scratch_operands = 0 : i64, tpu.core_type = #tpu.core_type<tc>, window_params = [{transform_indices = @transform_0, window_bounds = array<i64: 16, 144>}, {pipeline_mode = #tpu.pipeline_mode<synchronous>, transform_indices = @transform_1, window_bounds = array<i64: 144, 896>}, {pipeline_mode = #tpu.pipeline_mode<synchronous>, transform_indices = @transform_2, window_bounds = array<i64: 7, 128>}, {transform_indices = @transform_3, window_bounds = array<i64: 16, 128>}]} {
    %c0 = arith.constant 0 : index
    %c0_0 = arith.constant 0 : index
    %0 = vector.load %arg1[%c0, %c0_0] : memref<16x144xf32, #tpu.memory_space<vmem>>, vector<16x144xf32>
    %c0_1 = arith.constant 0 : index
    %c0_2 = arith.constant 0 : index
    %1 = vector.load %arg2[%c0_1, %c0_2] : memref<144x896xf32, #tpu.memory_space<vmem>>, vector<144x896xf32>
    %cst = arith.constant dense<0.000000e+00> : vector<16x896xf32>
    %2 = tpu.matmul %0, %1, %cst {dimension_numbers = #tpu.dot_dimension_numbers<[1], [0], [0], [1], [0, 0, 1, 1], [], []>} : vector<16x144xf32>, vector<144x896xf32>, vector<16x896xf32> -> vector<16x896xf32>
    %3 = vector.extract_strided_slice %2 {offsets = [0, 0], sizes = [16, 128], strides = [1, 1]} : vector<16x896xf32> to vector<16x128xf32>
    %c0_3 = arith.constant 0 : index
    %c0_4 = arith.constant 0 : index
    %4 = vector.load %arg3[%c0_3, %c0_4] : memref<7x128xf32, #tpu.memory_space<vmem>>, vector<1x128xf32>
    %5 = vector.broadcast %4 : vector<1x128xf32> to vector<16x128xf32>
    %6 = arith.addf %3, %5 : vector<16x128xf32>
    %7 = vector.extract_strided_slice %2 {offsets = [0, 128], sizes = [16, 128], strides = [1, 1]} : vector<16x896xf32> to vector<16x128xf32>
    %c1 = arith.constant 1 : index
    %c0_5 = arith.constant 0 : index
    %8 = vector.load %arg3[%c1, %c0_5] : memref<7x128xf32, #tpu.memory_space<vmem>>, vector<1x128xf32>
    %9 = vector.broadcast %8 : vector<1x128xf32> to vector<16x128xf32>
    %10 = arith.addf %7, %9 : vector<16x128xf32>
    %11 = arith.maximumf %6, %10 : vector<16x128xf32>
    %12 = vector.extract_strided_slice %2 {offsets = [0, 256], sizes = [16, 128], strides = [1, 1]} : vector<16x896xf32> to vector<16x128xf32>
    %c2 = arith.constant 2 : index
    %c0_6 = arith.constant 0 : index
    %13 = vector.load %arg3[%c2, %c0_6] : memref<7x128xf32, #tpu.memory_space<vmem>>, vector<1x128xf32>
    %14 = vector.broadcast %13 : vector<1x128xf32> to vector<16x128xf32>
    %15 = arith.addf %12, %14 : vector<16x128xf32>
    %16 = arith.maximumf %11, %15 : vector<16x128xf32>
    %17 = vector.extract_strided_slice %2 {offsets = [0, 384], sizes = [16, 128], strides = [1, 1]} : vector<16x896xf32> to vector<16x128xf32>
    %c3 = arith.constant 3 : index
    %c0_7 = arith.constant 0 : index
    %18 = vector.load %arg3[%c3, %c0_7] : memref<7x128xf32, #tpu.memory_space<vmem>>, vector<1x128xf32>
    %19 = vector.broadcast %18 : vector<1x128xf32> to vector<16x128xf32>
    %20 = arith.addf %17, %19 : vector<16x128xf32>
    %21 = arith.maximumf %16, %20 : vector<16x128xf32>
    %22 = vector.extract_strided_slice %2 {offsets = [0, 512], sizes = [16, 128], strides = [1, 1]} : vector<16x896xf32> to vector<16x128xf32>
    %c4 = arith.constant 4 : index
    %c0_8 = arith.constant 0 : index
    %23 = vector.load %arg3[%c4, %c0_8] : memref<7x128xf32, #tpu.memory_space<vmem>>, vector<1x128xf32>
    %24 = vector.broadcast %23 : vector<1x128xf32> to vector<16x128xf32>
    %25 = arith.addf %22, %24 : vector<16x128xf32>
    %26 = arith.maximumf %21, %25 : vector<16x128xf32>
    %27 = vector.extract_strided_slice %2 {offsets = [0, 640], sizes = [16, 128], strides = [1, 1]} : vector<16x896xf32> to vector<16x128xf32>
    %c5 = arith.constant 5 : index
    %c0_9 = arith.constant 0 : index
    %28 = vector.load %arg3[%c5, %c0_9] : memref<7x128xf32, #tpu.memory_space<vmem>>, vector<1x128xf32>
    %29 = vector.broadcast %28 : vector<1x128xf32> to vector<16x128xf32>
    %30 = arith.addf %27, %29 : vector<16x128xf32>
    %31 = arith.maximumf %26, %30 : vector<16x128xf32>
    %32 = vector.extract_strided_slice %2 {offsets = [0, 768], sizes = [16, 128], strides = [1, 1]} : vector<16x896xf32> to vector<16x128xf32>
    %c6 = arith.constant 6 : index
    %c0_10 = arith.constant 0 : index
    %33 = vector.load %arg3[%c6, %c0_10] : memref<7x128xf32, #tpu.memory_space<vmem>>, vector<1x128xf32>
    %34 = vector.broadcast %33 : vector<1x128xf32> to vector<16x128xf32>
    %35 = arith.addf %32, %34 : vector<16x128xf32>
    %36 = arith.maximumf %31, %35 : vector<16x128xf32>
    %c0_11 = arith.constant 0 : index
    %c0_12 = arith.constant 0 : index
    %37 = vector.load %arg4[%c0_11, %c0_12] : memref<16x128xf32, #tpu.memory_space<vmem>>, vector<16x128xf32>
    tpu.vector_store %arg4[%c0_11, %c0_12], %36 {strides = array<i32>} : memref<16x128xf32, #tpu.memory_space<vmem>>, vector<16x128xf32>,
    return
  }
  func.func @transform_0(%arg0: i32) -> (i32, i32) {
    %c0_i32 = arith.constant 0 : i32
    %c0_i32_0 = arith.constant 0 : i32
    return %arg0, %c0_i32 : i32, i32
  }
  func.func @transform_1(%arg0: i32) -> (i32, i32) {
    %c0_i32 = arith.constant 0 : i32
    %c0_i32_0 = arith.constant 0 : i32
    %c0_i32_1 = arith.constant 0 : i32
    return %c0_i32, %c0_i32_0 : i32, i32
  }
  func.func @transform_2(%arg0: i32) -> (i32, i32) {
    %c0_i32 = arith.constant 0 : i32
    %c0_i32_0 = arith.constant 0 : i32
    %c0_i32_1 = arith.constant 0 : i32
    return %c0_i32, %c0_i32_0 : i32, i32
  }
  func.func @transform_3(%arg0: i32) -> (i32, i32) {
    %c0_i32 = arith.constant 0 : i32
    %c0_i32_0 = arith.constant 0 : i32
    return %arg0, %c0_i32 : i32, i32
  }
}

</mosaic_0001>

<llo_original>
// kernel: tpu_custom_call.1
$region0: #{tpu_custom_call.1}
  #allocation0 [shape = 'u32[]', space=smem, size = 0x4, offset = 0x4, fixed_abs, tag = 'smem constant byte address 0x4 - core index']
  #allocation1 [shape = 'u32[72,128]{1,0:T(1,128)}', space=vmem, size = 0x9000, scoped, tag = 'internal scratch']
  %s0 = inlined_call_operand.hbm [shape: f32[16,144], index: 0, kind: input, shape index: {}]
  %s1 = inlined_call_operand.hbm [shape: f32[144,896], index: 1, kind: input, shape index: {}]
  %s2 = inlined_call_operand.hbm [shape: f32[7,128], index: 2, kind: input, shape index: {}]
  %s3 = inlined_call_operand.hbm [shape: f32[16,128], index: 3, kind: output, shape index: {}]
  %s4 = sld [smem:[#allocation0]]
  $region34: #{tpu_custom_call.1} parent=0
    _
  %s6 = ssub.s32 1, %s4
  %s7 = scalar_select 0, %s6, %s4
  $region1: #{tpu_custom_call.1} parent=0
    #allocation2 [shape = 'u8[16384]{0}', space=vmem, size = 0x4000, scoped, tag = 'input window, operand 0, single buffered']
    #allocation3 [shape = 's32[1]{0}', space=sflag, size = 0x4, scoped, tag = 'scoped memory for tpu_custom_call.1']
    #allocation4 [shape = 's32[1]{0}', space=sflag, size = 0x4, scoped, tag = 'scoped memory for tpu_custom_call.1']
    #allocation5 [shape = 'u8[516096]{0}', space=vmem, size = 0x7e000, scoped, tag = 'input window, operand 1, single buffered']
    #allocation6 [shape = 's32[1]{0}', space=sflag, size = 0x4, scoped, tag = 'scoped memory for tpu_custom_call.1']
    #allocation7 [shape = 'u8[4096]{0}', space=vmem, size = 0x1000, scoped, tag = 'input window, operand 2, single buffered']
    #allocation8 [shape = 'u8[8192]{0}', space=vmem, size = 0x2000, scoped, tag = 'output window, operand 0, single buffered']
    %8 = vsyncpa [#allocation3], 0
    %9 = vsyncpa [#allocation6], 0
    %10 = vsyncpa [#allocation4], 0
    // Predicated region
    $region2: #{tpu_custom_call.1} parent=1 // pred_check
      _
    $region3: #{tpu_custom_call.1} parent=1 // pred_check_branch
      %12 = sbr.rel (0) target = $region5
    $region4: #{tpu_custom_call.1} parent=1 // pred_region
      %14 = vsyncadd [#allocation3], 0
      %s15 = sshll.u32 %s0, 4
      %s16 = int_to_ptr.hbm [resolvable:$true] %s15
      %s17 = sshll.u32 [#allocation2], 4
      %s18 = int_to_ptr.vmem [resolvable:$true] %s17
      %23 = dma.hbm_to_vmem [thread:$0]  %s16, 512, %s18, [#allocation3], 256, 256, 16
    $region5: #{tpu_custom_call.1} parent=1 // pred_fallthru
      _
    // Predicated region
    $region6: #{tpu_custom_call.1} parent=1 // pred_check
      _
    $region7: #{tpu_custom_call.1} parent=1 // pred_check_branch
      %25 = sbr.rel (0) target = $region9
    $region8: #{tpu_custom_call.1} parent=1 // pred_region
      %27 = vsyncadd [#allocation6], 0
      %s28 = sshll.u32 %s1, 4
      %s29 = int_to_ptr.hbm [resolvable:$true] %s28
      %s30 = sshll.u32 [#allocation5], 4
      %s31 = int_to_ptr.vmem [resolvable:$true] %s30
      %36 = dma.hbm_to_vmem [thread:$0]  %s29, 16128, %s31, [#allocation6], 896, 896, 56
    $region9: #{tpu_custom_call.1} parent=1 // pred_fallthru
      _
    // Predicated region
    $region10: #{tpu_custom_call.1} parent=1 // pred_check
      _
    $region11: #{tpu_custom_call.1} parent=1 // pred_check_branch
      %38 = sbr.rel (0) target = $region13
    $region12: #{tpu_custom_call.1} parent=1 // pred_region
      %40 = vsyncadd [#allocation6], 0
      %s42 = sshll.u32 %s2, 4
      %s43 = int_to_ptr.hbm [resolvable:$true] %s42
      %s44 = sshll.u32 [#allocation7], 4
      %s45 = int_to_ptr.vmem [resolvable:$true] %s44
      %47 = dma.hbm_to_vmem [thread:$0]  %s43, 128, %s45, [#allocation6]
    $region13: #{tpu_custom_call.1} parent=1 // pred_fallthru
      _
    // Predicated region
    $region14: #{tpu_custom_call.1} parent=1 // pred_check
      _
    $region15: #{tpu_custom_call.1} parent=1 // pred_check_branch
      %49 = sbr.rel (0) target = $region17
    $region16: #{tpu_custom_call.1} parent=1 // pred_region
      %51 = dma.done [#allocation3], 512
    $region17: #{tpu_custom_call.1} parent=1 // pred_fallthru
      _
    // Predicated region
    $region18: #{tpu_custom_call.1} parent=1 // pred_check
      _
    $region19: #{tpu_custom_call.1} parent=1 // pred_check_branch
      %53 = sbr.rel (0) target = $region21
    $region20: #{tpu_custom_call.1} parent=1 // pred_region
      %55 = dma.done [#allocation6], 16128
    $region21: #{tpu_custom_call.1} parent=1 // pred_fallthru
      _
    // Predicated region
    $region22: #{tpu_custom_call.1} parent=1 // pred_check
      _
    $region23: #{tpu_custom_call.1} parent=1 // pred_check_branch
      %57 = sbr.rel (0) target = $region25
    $region24: #{tpu_custom_call.1} parent=1 // pred_region
      %59 = dma.done [#allocation6], 128
    $region25: #{tpu_custom_call.1} parent=1 // pred_fallthru
      _
    %v60 = vld [vmem:[#allocation2] sm:$0xff]
    %v61 = vld [vmem:[#allocation2 + $0x8] sm:$0xff]
    %v62 = vld [vmem:[#allocation2 + $0x10] sm:$0xff]
    %v63 = vld [vmem:[#allocation2 + $0x18] sm:$0xff]
    %v64 = vld [vmem:[#allocation5] sm:$0xff]
    %v65 = vld [vmem:[#allocation5 + $0x8] sm:$0xff]
    %v66 = vld [vmem:[#allocation5 + $0x10] sm:$0xff]
    %v67 = vld [vmem:[#allocation5 + $0x18] sm:$0xff]
    %v68 = vld [vmem:[#allocation5 + $0x20] sm:$0xff]
    %v69 = vld [vmem:[#allocation5 + $0x28] sm:$0xff]
    %v70 = vld [vmem:[#allocation5 + $0x30] sm:$0xff]
    %v71 = vld [vmem:[#allocation5 + $0x38] sm:$0xff]
    %v72 = vld [vmem:[#allocation5 + $0x40] sm:$0xff]
    %v73 = vld [vmem:[#allocation5 + $0x48] sm:$0xff]
    %v74 = vld [vmem:[#allocation5 + $0x50] sm:$0xff]
    %v75 = vld [vmem:[#allocation5 + $0x58] sm:$0xff]
    %v76 = vld [vmem:[#allocation5 + $0x60] sm:$0xff]
    %v77 = vld [vmem:[#allocation5 + $0x68] sm:$0xff]
    %v78 = vld [vmem:[#allocation5 + $0x70] sm:$0xff]
    %v79 = vld [vmem:[#allocation5 + $0x78] sm:$0xff]
    %v80 = vld [vmem:[#allocation5 + $0x80] sm:$0xff]
    %v81 = vld [vmem:[#allocation5 + $0x88] sm:$0xff]
    %v82 = vld [vmem:[#allocation5 + $0x90] sm:$0xff]
    %v83 = vld [vmem:[#allocation5 + $0x98] sm:$0xff]
    %v84 = vld [vmem:[#allocation5 + $0xa0] sm:$0xff]
    %v85 = vld [vmem:[#allocation5 + $0xa8] sm:$0xff]
    %v86 = vld [vmem:[#allocation5 + $0xb0] sm:$0xff]
    %v87 = vld [vmem:[#allocation5 + $0xb8] sm:$0xff]
    %v88 = vld [vmem:[#allocation5 + $0xc0] sm:$0xff]
    %v89 = vld [vmem:[#allocation5 + $0xc8] sm:$0xff]
    %v90 = vld [vmem:[#allocation5 + $0xd0] sm:$0xff]
    %v91 = vld [vmem:[#allocation5 + $0xd8] sm:$0xff]
    %v92 = vld [vmem:[#allocation5 + $0xe0] sm:$0xff]
    %v93 = vld [vmem:[#allocation5 + $0xe8] sm:$0xff]
    %v94 = vld [vmem:[#allocation5 + $0xf0] sm:$0xff]
    %v95 = vld [vmem:[#allocation5 + $0xf8] sm:$0xff]
    %v96 = vld [vmem:[#allocation5 + $0x100] sm:$0xff]
    %v97 = vld [vmem:[#allocation5 + $0x108] sm:$0xff]
    %v98 = vld [vmem:[#allocation5 + $0x110] sm:$0xff]
    %v99 = vld [vmem:[#allocation5 + $0x118] sm:$0xff]
    %v100 = vld [vmem:[#allocation5 + $0x120] sm:$0xff]
    %v101 = vld [vmem:[#allocation5 + $0x128] sm:$0xff]
    %v102 = vld [vmem:[#allocation5 + $0x130] sm:$0xff]
    %v103 = vld [vmem:[#allocation5 + $0x138] sm:$0xff]
    %v104 = vld [vmem:[#allocation5 + $0x140] sm:$0xff]
    %v105 = vld [vmem:[#allocation5 + $0x148] sm:$0xff]
    %v106 = vld [vmem:[#allocation5 + $0x150] sm:$0xff]
    %v107 = vld [vmem:[#allocation5 + $0x158] sm:$0xff]
    %v108 = vld [vmem:[#allocation5 + $0x160] sm:$0xff]
    %v109 = vld [vmem:[#allocation5 + $0x168] sm:$0xff]
    %v110 = vld [vmem:[#allocation5 + $0x170] sm:$0xff]
    %v111 = vld [vmem:[#allocation5 + $0x178] sm:$0xff]
    %v112 = vld [vmem:[#allocation5 + $0x180] sm:$0xff]
    %v113 = vld [vmem:[#allocation5 + $0x188] sm:$0xff]
    %v114 = vld [vmem:[#allocation5 + $0x190] sm:$0xff]
    %v115 = vld [vmem:[#allocation5 + $0x198] sm:$0xff]
    %v116 = vld [vmem:[#allocation5 + $0x1a0] sm:$0xff]
    %v117 = vld [vmem:[#allocation5 + $0x1a8] sm:$0xff]
    %v118 = vld [vmem:[#allocation5 + $0x1b0] sm:$0xff]
    %v119 = vld [vmem:[#allocation5 + $0x1b8] sm:$0xff]
    %v120 = vld [vmem:[#allocation5 + $0x1c0] sm:$0xff]
    %v121 = vld [vmem:[#allocation5 + $0x1c8] sm:$0xff]
    %v122 = vld [vmem:[#allocation5 + $0x1d0] sm:$0xff]
    %v123 = vld [vmem:[#allocation5 + $0x1d8] sm:$0xff]
    %v124 = vld [vmem:[#allocation5 + $0x1e0] sm:$0xff]
    %v125 = vld [vmem:[#allocation5 + $0x1e8] sm:$0xff]
    %v126 = vld [vmem:[#allocation5 + $0x1f0] sm:$0xff]
    %v127 = vld [vmem:[#allocation5 + $0x1f8] sm:$0xff]
    %v128 = vld [vmem:[#allocation5 + $0x200] sm:$0xff]
    %v129 = vld [vmem:[#allocation5 + $0x208] sm:$0xff]
    %v130 = vld [vmem:[#allocation5 + $0x210] sm:$0xff]
    %v131 = vld [vmem:[#allocation5 + $0x218] sm:$0xff]
    %v132 = vld [vmem:[#allocation5 + $0x220] sm:$0xff]
    %v133 = vld [vmem:[#allocation5 + $0x228] sm:$0xff]
    %v134 = vld [vmem:[#allocation5 + $0x230] sm:$0xff]
    %v135 = vld [vmem:[#allocation5 + $0x238] sm:$0xff]
    %v136 = vld [vmem:[#allocation5 + $0x240] sm:$0xff]
    %v137 = vld [vmem:[#allocation5 + $0x248] sm:$0xff]
    %v138 = vld [vmem:[#allocation5 + $0x250] sm:$0xff]
    %v139 = vld [vmem:[#allocation5 + $0x258] sm:$0xff]
    %v140 = vld [vmem:[#allocation5 + $0x260] sm:$0xff]
    %v141 = vld [vmem:[#allocation5 + $0x268] sm:$0xff]
    %v142 = vld [vmem:[#allocation5 + $0x270] sm:$0xff]
    %v143 = vld [vmem:[#allocation5 + $0x278] sm:$0xff]
    %v144 = vld [vmem:[#allocation5 + $0x280] sm:$0xff]
    %v145 = vld [vmem:[#allocation5 + $0x288] sm:$0xff]
    %v146 = vld [vmem:[#allocation5 + $0x290] sm:$0xff]
    %v147 = vld [vmem:[#allocation5 + $0x298] sm:$0xff]
    %v148 = vld [vmem:[#allocation5 + $0x2a0] sm:$0xff]
    %v149 = vld [vmem:[#allocation5 + $0x2a8] sm:$0xff]
    %v150 = vld [vmem:[#allocation5 + $0x2b0] sm:$0xff]
    %v151 = vld [vmem:[#allocation5 + $0x2b8] sm:$0xff]
    %v152 = vld [vmem:[#allocation5 + $0x2c0] sm:$0xff]
    %v153 = vld [vmem:[#allocation5 + $0x2c8] sm:$0xff]
    %v154 = vld [vmem:[#allocation5 + $0x2d0] sm:$0xff]
    %v155 = vld [vmem:[#allocation5 + $0x2d8] sm:$0xff]
    %v156 = vld [vmem:[#allocation5 + $0x2e0] sm:$0xff]
    %v157 = vld [vmem:[#allocation5 + $0x2e8] sm:$0xff]
    %v158 = vld [vmem:[#allocation5 + $0x2f0] sm:$0xff]
    %v159 = vld [vmem:[#allocation5 + $0x2f8] sm:$0xff]
    %v160 = vld [vmem:[#allocation5 + $0x300] sm:$0xff]
    %v161 = vld [vmem:[#allocation5 + $0x308] sm:$0xff]
    %v162 = vld [vmem:[#allocation5 + $0x310] sm:$0xff]
    %v163 = vld [vmem:[#allocation5 + $0x318] sm:$0xff]
    %v164 = vld [vmem:[#allocation5 + $0x320] sm:$0xff]
    %v165 = vld [vmem:[#allocation5 + $0x328] sm:$0xff]
    %v166 = vld [vmem:[#allocation5 + $0x330] sm:$0xff]
    %v167 = vld [vmem:[#allocation5 + $0x338] sm:$0xff]
    %v168 = vld [vmem:[#allocation5 + $0x340] sm:$0xff]
    %v169 = vld [vmem:[#allocation5 + $0x348] sm:$0xff]
    %v170 = vld [vmem:[#allocation5 + $0x350] sm:$0xff]
    %v171 = vld [vmem:[#allocation5 + $0x358] sm:$0xff]
    %v172 = vld [vmem:[#allocation5 + $0x360] sm:$0xff]
    %v173 = vld [vmem:[#allocation5 + $0x368] sm:$0xff]
    %v174 = vld [vmem:[#allocation5 + $0x370] sm:$0xff]
    %v175 = vld [vmem:[#allocation5 + $0x378] sm:$0xff]
    %v176 = vld [vmem:[#allocation5 + $0x380] sm:$0xff]
    %v177 = vld [vmem:[#allocation5 + $0x388] sm:$0xff]
    %v178 = vld [vmem:[#allocation5 + $0x390] sm:$0xff]
    %v179 = vld [vmem:[#allocation5 + $0x398] sm:$0xff]
    %v180 = vld [vmem:[#allocation5 + $0x3a0] sm:$0xff]
    %v181 = vld [vmem:[#allocation5 + $0x3a8] sm:$0xff]
    %v182 = vld [vmem:[#allocation5 + $0x3b0] sm:$0xff]
    %v183 = vld [vmem:[#allocation5 + $0x3b8] sm:$0xff]
    %v184 = vld [vmem:[#allocation5 + $0x3c0] sm:$0xff]
    %v185 = vld [vmem:[#allocation5 + $0x3c8] sm:$0xff]
    %v186 = vld [vmem:[#allocation5 + $0x3d0] sm:$0xff]
    %v187 = vld [vmem:[#allocation5 + $0x3d8] sm:$0xff]
    %v188 = vld [vmem:[#allocation5 + $0x3e0] sm:$0xff]
    %v189 = vld [vmem:[#allocation5 + $0x3e8] sm:$0xff]
    %vm190 = vcmask 130048
    %v192 = vsel %vm190, %v61, 0
    %v195 = vsel %vm190, %v63, 0
    %197 = vmatpush.msra.mxu0 %v169
    %198 = vmatpush.msra.mxu0 %v162
    %199 = vmatpush.msra.mxu0 %v155
    %200 = vmatpush.msra.mxu0 %v148
    %201 = vmatpush.msra.mxu0 %v141
    %202 = vmatpush.msra.mxu0 %v134
    %203 = vmatpush.msra.mxu0 %v127
    %204 = vmatpush.msra.mxu0 %v120
    %205 = vmatpush.msra.mxu0 %v113
    %206 = vmatpush.msra.mxu0 %v106
    %207 = vmatpush.msra.mxu0 %v99
    %208 = vmatpush.msra.mxu0 %v92
    %209 = vmatpush.msra.mxu0 %v85
    %210 = vmatpush.msra.mxu0 %v78
    %211 = vmatpush.msra.mxu0 %v71
    %212 = vmatpush.msra.mxu0 %v64
    %213 = vmatmul.f32.gmra.mxu0 %v60
    %v214 = vpop.f32.mrf.mxu0
    %v215 = vadd.f32 0.0, %v214
    %216 = vmatmul.f32.gmra.mxu0 %v62
    %v217 = vpop.f32.mrf.mxu0
    %v218 = vadd.f32 0.0, %v217
    %219 = vdwg.mxu0
    %220 = vmatpush.msra.mxu0 0.0
    %221 = vmatpush.msra.mxu0 0.0
    %222 = vmatpush.msra.mxu0 0.0
    %223 = vmatpush.msra.mxu0 0.0
    %224 = vmatpush.msra.mxu0 0.0
    %225 = vmatpush.msra.mxu0 0.0
    %226 = vmatpush.msra.mxu0 0.0
    %227 = vmatpush.msra.mxu0 0.0
    %228 = vmatpush.msra.mxu0 0.0
    %229 = vmatpush.msra.mxu0 0.0
    %230 = vmatpush.msra.mxu0 0.0
    %231 = vmatpush.msra.mxu0 0.0
    %232 = vmatpush.msra.mxu0 0.0
    %233 = vmatpush.msra.mxu0 0.0
    %234 = vmatpush.msra.mxu0 %v183
    %235 = vmatpush.msra.mxu0 %v176
    %236 = vmatmul.f32.gmra.mxu0 %v192
    %v237 = vpop.f32.mrf.mxu0
    %v238 = vadd.f32 %v215, %v237
    %239 = vmatmul.f32.gmra.mxu0 %v195
    %v240 = vpop.f32.mrf.mxu0
    %v241 = vadd.f32 %v218, %v240
    %242 = vdwg.mxu0
    %243 = vmatpush.msra.mxu0 %v170
    %244 = vmatpush.msra.mxu0 %v163
    %245 = vmatpush.msra.mxu0 %v156
    %246 = vmatpush.msra.mxu0 %v149
    %247 = vmatpush.msra.mxu0 %v142
    %248 = vmatpush.msra.mxu0 %v135
    %249 = vmatpush.msra.mxu0 %v128
    %250 = vmatpush.msra.mxu0 %v121
    %251 = vmatpush.msra.mxu0 %v114
    %252 = vmatpush.msra.mxu0 %v107
    %253 = vmatpush.msra.mxu0 %v100
    %254 = vmatpush.msra.mxu0 %v93
    %255 = vmatpush.msra.mxu0 %v86
    %256 = vmatpush.msra.mxu0 %v79
    %257 = vmatpush.msra.mxu0 %v72
    %258 = vmatpush.msra.mxu0 %v65
    %259 = vmatmul.f32.gmra.mxu0 %v60
    %v260 = vpop.f32.mrf.mxu0
    %v261 = vadd.f32 0.0, %v260
    %262 = vmatmul.f32.gmra.mxu0 %v62
    %v263 = vpop.f32.mrf.mxu0
    %v264 = vadd.f32 0.0, %v263
    %265 = vdwg.mxu0
    %266 = vmatpush.msra.mxu0 0.0
    %267 = vmatpush.msra.mxu0 0.0
    %268 = vmatpush.msra.mxu0 0.0
    %269 = vmatpush.msra.mxu0 0.0
    %270 = vmatpush.msra.mxu0 0.0
    %271 = vmatpush.msra.mxu0 0.0
    %272 = vmatpush.msra.mxu0 0.0
    %273 = vmatpush.msra.mxu0 0.0
    %274 = vmatpush.msra.mxu0 0.0
    %275 = vmatpush.msra.mxu0 0.0
    %276 = vmatpush.msra.mxu0 0.0
    %277 = vmatpush.msra.mxu0 0.0
    %278 = vmatpush.msra.mxu0 0.0
    %279 = vmatpush.msra.mxu0 0.0
    %280 = vmatpush.msra.mxu0 %v184
    %281 = vmatpush.msra.mxu0 %v177
    %282 = vmatmul.f32.gmra.mxu0 %v192
    %v283 = vpop.f32.mrf.mxu0
    %v284 = vadd.f32 %v261, %v283
    %285 = vmatmul.f32.gmra.mxu0 %v195
    %v286 = vpop.f32.mrf.mxu0
    %v287 = vadd.f32 %v264, %v286
    %288 = vdwg.mxu0
    %289 = vmatpush.msra.mxu0 %v171
    %290 = vmatpush.msra.mxu0 %v164
    %291 = vmatpush.msra.mxu0 %v157
    %292 = vmatpush.msra.mxu0 %v150
    %293 = vmatpush.msra.mxu0 %v143
    %294 = vmatpush.msra.mxu0 %v136
    %295 = vmatpush.msra.mxu0 %v129
    %296 = vmatpush.msra.mxu0 %v122
    %297 = vmatpush.msra.mxu0 %v115
    %298 = vmatpush.msra.mxu0 %v108
    %299 = vmatpush.msra.mxu0 %v101
    %300 = vmatpush.msra.mxu0 %v94
    %301 = vmatpush.msra.mxu0 %v87
    %302 = vmatpush.msra.mxu0 %v80
    %303 = vmatpush.msra.mxu0 %v73
    %304 = vmatpush.msra.mxu0 %v66
    %305 = vmatmul.f32.gmra.mxu0 %v60
    %v306 = vpop.f32.mrf.mxu0
    %v307 = vadd.f32 0.0, %v306
    %308 = vmatmul.f32.gmra.mxu0 %v62
    %v309 = vpop.f32.mrf.mxu0
    %v310 = vadd.f32 0.0, %v309
    %311 = vdwg.mxu0
    %312 = vmatpush.msra.mxu0 0.0
    %313 = vmatpush.msra.mxu0 0.0
    %314 = vmatpush.msra.mxu0 0.0
    %315 = vmatpush.msra.mxu0 0.0
    %316 = vmatpush.msra.mxu0 0.0
    %317 = vmatpush.msra.mxu0 0.0
    %318 = vmatpush.msra.mxu0 0.0
    %319 = vmatpush.msra.mxu0 0.0
    %320 = vmatpush.msra.mxu0 0.0
    %321 = vmatpush.msra.mxu0 0.0
    %322 = vmatpush.msra.mxu0 0.0
    %323 = vmatpush.msra.mxu0 0.0
    %324 = vmatpush.msra.mxu0 0.0
    %325 = vmatpush.msra.mxu0 0.0
    %326 = vmatpush.msra.mxu0 %v185
    %327 = vmatpush.msra.mxu0 %v178
    %328 = vmatmul.f32.gmra.mxu0 %v192
    %v329 = vpop.f32.mrf.mxu0
    %v330 = vadd.f32 %v307, %v329
    %331 = vmatmul.f32.gmra.mxu0 %v195
    %v332 = vpop.f32.mrf.mxu0
    %v333 = vadd.f32 %v310, %v332
    %334 = vdwg.mxu0
    %335 = vmatpush.msra.mxu0 %v172
    %336 = vmatpush.msra.mxu0 %v165
    %337 = vmatpush.msra.mxu0 %v158
    %338 = vmatpush.msra.mxu0 %v151
    %339 = vmatpush.msra.mxu0 %v144
    %340 = vmatpush.msra.mxu0 %v137
    %341 = vmatpush.msra.mxu0 %v130
    %342 = vmatpush.msra.mxu0 %v123
    %343 = vmatpush.msra.mxu0 %v116
    %344 = vmatpush.msra.mxu0 %v109
    %345 = vmatpush.msra.mxu0 %v102
    %346 = vmatpush.msra.mxu0 %v95
    %347 = vmatpush.msra.mxu0 %v88
    %348 = vmatpush.msra.mxu0 %v81
    %349 = vmatpush.msra.mxu0 %v74
    %350 = vmatpush.msra.mxu0 %v67
    %351 = vmatmul.f32.gmra.mxu0 %v60
    %v352 = vpop.f32.mrf.mxu0
    %v353 = vadd.f32 0.0, %v352
    %354 = vmatmul.f32.gmra.mxu0 %v62
    %v355 = vpop.f32.mrf.mxu0
    %v356 = vadd.f32 0.0, %v355
    %357 = vdwg.mxu0
    %358 = vmatpush.msra.mxu0 0.0
    %359 = vmatpush.msra.mxu0 0.0
    %360 = vmatpush.msra.mxu0 0.0
    %361 = vmatpush.msra.mxu0 0.0
    %362 = vmatpush.msra.mxu0 0.0
    %363 = vmatpush.msra.mxu0 0.0
    %364 = vmatpush.msra.mxu0 0.0
    %365 = vmatpush.msra.mxu0 0.0
    %366 = vmatpush.msra.mxu0 0.0
    %367 = vmatpush.msra.mxu0 0.0
    %368 = vmatpush.msra.mxu0 0.0
    %369 = vmatpush.msra.mxu0 0.0
    %370 = vmatpush.msra.mxu0 0.0
    %371 = vmatpush.msra.mxu0 0.0
    %372 = vmatpush.msra.mxu0 %v186
    %373 = vmatpush.msra.mxu0 %v179
    %374 = vmatmul.f32.gmra.mxu0 %v192
    %v375 = vpop.f32.mrf.mxu0
    %v376 = vadd.f32 %v353, %v375
    %377 = vmatmul.f32.gmra.mxu0 %v195
    %v378 = vpop.f32.mrf.mxu0
    %v379 = vadd.f32 %v356, %v378
    %380 = vdwg.mxu0
    %381 = vmatpush.msra.mxu0 %v173
    %382 = vmatpush.msra.mxu0 %v166
    %383 = vmatpush.msra.mxu0 %v159
    %384 = vmatpush.msra.mxu0 %v152
    %385 = vmatpush.msra.mxu0 %v145
    %386 = vmatpush.msra.mxu0 %v138
    %387 = vmatpush.msra.mxu0 %v131
    %388 = vmatpush.msra.mxu0 %v124
    %389 = vmatpush.msra.mxu0 %v117
    %390 = vmatpush.msra.mxu0 %v110
    %391 = vmatpush.msra.mxu0 %v103
    %392 = vmatpush.msra.mxu0 %v96
    %393 = vmatpush.msra.mxu0 %v89
    %394 = vmatpush.msra.mxu0 %v82
    %395 = vmatpush.msra.mxu0 %v75
    %396 = vmatpush.msra.mxu0 %v68
    %397 = vmatmul.f32.gmra.mxu0 %v60
    %v398 = vpop.f32.mrf.mxu0
    %v399 = vadd.f32 0.0, %v398
    %400 = vmatmul.f32.gmra.mxu0 %v62
    %v401 = vpop.f32.mrf.mxu0
    %v402 = vadd.f32 0.0, %v401
    %403 = vdwg.mxu0
    %404 = vmatpush.msra.mxu0 0.0
    %405 = vmatpush.msra.mxu0 0.0
    %406 = vmatpush.msra.mxu0 0.0
    %407 = vmatpush.msra.mxu0 0.0
    %408 = vmatpush.msra.mxu0 0.0
    %409 = vmatpush.msra.mxu0 0.0
    %410 = vmatpush.msra.mxu0 0.0
    %411 = vmatpush.msra.mxu0 0.0
    %412 = vmatpush.msra.mxu0 0.0
    %413 = vmatpush.msra.mxu0 0.0
    %414 = vmatpush.msra.mxu0 0.0
    %415 = vmatpush.msra.mxu0 0.0
    %416 = vmatpush.msra.mxu0 0.0
    %417 = vmatpush.msra.mxu0 0.0
    %418 = vmatpush.msra.mxu0 %v187
    %419 = vmatpush.msra.mxu0 %v180
    %420 = vmatmul.f32.gmra.mxu0 %v192
    %v421 = vpop.f32.mrf.mxu0
    %v422 = vadd.f32 %v399, %v421
    %423 = vmatmul.f32.gmra.mxu0 %v195
    %v424 = vpop.f32.mrf.mxu0
    %v425 = vadd.f32 %v402, %v424
    %426 = vdwg.mxu0
    %427 = vmatpush.msra.mxu0 %v174
    %428 = vmatpush.msra.mxu0 %v167
    %429 = vmatpush.msra.mxu0 %v160
    %430 = vmatpush.msra.mxu0 %v153
    %431 = vmatpush.msra.mxu0 %v146
    %432 = vmatpush.msra.mxu0 %v139
    %433 = vmatpush.msra.mxu0 %v132
    %434 = vmatpush.msra.mxu0 %v125
    %435 = vmatpush.msra.mxu0 %v118
    %436 = vmatpush.msra.mxu0 %v111
    %437 = vmatpush.msra.mxu0 %v104
    %438 = vmatpush.msra.mxu0 %v97
    %439 = vmatpush.msra.mxu0 %v90
    %440 = vmatpush.msra.mxu0 %v83
    %441 = vmatpush.msra.mxu0 %v76
    %442 = vmatpush.msra.mxu0 %v69
    %443 = vmatmul.f32.gmra.mxu0 %v60
    %v444 = vpop.f32.mrf.mxu0
    %v445 = vadd.f32 0.0, %v444
    %446 = vmatmul.f32.gmra.mxu0 %v62
    %v447 = vpop.f32.mrf.mxu0
    %v448 = vadd.f32 0.0, %v447
    %449 = vdwg.mxu0
    %450 = vmatpush.msra.mxu0 0.0
    %451 = vmatpush.msra.mxu0 0.0
    %452 = vmatpush.msra.mxu0 0.0
    %453 = vmatpush.msra.mxu0 0.0
    %454 = vmatpush.msra.mxu0 0.0
    %455 = vmatpush.msra.mxu0 0.0
    %456 = vmatpush.msra.mxu0 0.0
    %457 = vmatpush.msra.mxu0 0.0
    %458 = vmatpush.msra.mxu0 0.0
    %459 = vmatpush.msra.mxu0 0.0
    %460 = vmatpush.msra.mxu0 0.0
    %461 = vmatpush.msra.mxu0 0.0
    %462 = vmatpush.msra.mxu0 0.0
    %463 = vmatpush.msra.mxu0 0.0
    %464 = vmatpush.msra.mxu0 %v188
    %465 = vmatpush.msra.mxu0 %v181
    %466 = vmatmul.f32.gmra.mxu0 %v192
    %v467 = vpop.f32.mrf.mxu0
    %v468 = vadd.f32 %v445, %v467
    %469 = vmatmul.f32.gmra.mxu0 %v195
    %v470 = vpop.f32.mrf.mxu0
    %v471 = vadd.f32 %v448, %v470
    %472 = vdwg.mxu0
    %473 = vmatpush.msra.mxu0 %v175
    %474 = vmatpush.msra.mxu0 %v168
    %475 = vmatpush.msra.mxu0 %v161
    %476 = vmatpush.msra.mxu0 %v154
    %477 = vmatpush.msra.mxu0 %v147
    %478 = vmatpush.msra.mxu0 %v140
    %479 = vmatpush.msra.mxu0 %v133
    %480 = vmatpush.msra.mxu0 %v126
    %481 = vmatpush.msra.mxu0 %v119
    %482 = vmatpush.msra.mxu0 %v112
    %483 = vmatpush.msra.mxu0 %v105
    %484 = vmatpush.msra.mxu0 %v98
    %485 = vmatpush.msra.mxu0 %v91
    %486 = vmatpush.msra.mxu0 %v84
    %487 = vmatpush.msra.mxu0 %v77
    %488 = vmatpush.msra.mxu0 %v70
    %489 = vmatmul.f32.gmra.mxu0 %v60
    %v490 = vpop.f32.mrf.mxu0
    %v491 = vadd.f32 0.0, %v490
    %492 = vmatmul.f32.gmra.mxu0 %v62
    %v493 = vpop.f32.mrf.mxu0
    %v494 = vadd.f32 0.0, %v493
    %495 = vdwg.mxu0
    %496 = vmatpush.msra.mxu0 0.0
    %497 = vmatpush.msra.mxu0 0.0
    %498 = vmatpush.msra.mxu0 0.0
    %499 = vmatpush.msra.mxu0 0.0
    %500 = vmatpush.msra.mxu0 0.0
    %501 = vmatpush.msra.mxu0 0.0
    %502 = vmatpush.msra.mxu0 0.0
    %503 = vmatpush.msra.mxu0 0.0
    %504 = vmatpush.msra.mxu0 0.0
    %505 = vmatpush.msra.mxu0 0.0
    %506 = vmatpush.msra.mxu0 0.0
    %507 = vmatpush.msra.mxu0 0.0
    %508 = vmatpush.msra.mxu0 0.0
    %509 = vmatpush.msra.mxu0 0.0
    %510 = vmatpush.msra.mxu0 %v189
    %511 = vmatpush.msra.mxu0 %v182
    %512 = vmatmul.f32.gmra.mxu0 %v192
    %v513 = vpop.f32.mrf.mxu0
    %v514 = vadd.f32 %v491, %v513
    %515 = vmatmul.f32.gmra.mxu0 %v195
    %v516 = vpop.f32.mrf.mxu0
    %v517 = vadd.f32 %v494, %v516
    %518 = vdwg.mxu0
    %v519 = vld [vmem:[#allocation7] sm:$0x1]
    %v520 = vperm.slane %v519, 0
    %v521 = vadd.f32 %v238, %v520
    %v522 = vadd.f32 %v241, %v520
    %v523 = vld [vmem:[#allocation7 + $0x1] sm:$0x1]
    %v524 = vperm.slane %v523, 0
    %v525 = vadd.f32 %v284, %v524
    %v526 = vadd.f32 %v287, %v524
    %v527 = vmax.f32 %v521, %v525
    %v528 = vmax.f32 %v522, %v526
    %v529 = vld [vmem:[#allocation7 + $0x2] sm:$0x1]
    %v530 = vperm.slane %v529, 0
    %v531 = vadd.f32 %v330, %v530
    %v532 = vadd.f32 %v333, %v530
    %v533 = vmax.f32 %v527, %v531
    %v534 = vmax.f32 %v528, %v532
    %v535 = vld [vmem:[#allocation7 + $0x3] sm:$0x1]
    %v536 = vperm.slane %v535, 0
    %v537 = vadd.f32 %v376, %v536
    %v538 = vadd.f32 %v379, %v536
    %v539 = vmax.f32 %v533, %v537
    %v540 = vmax.f32 %v534, %v538
    %v541 = vld [vmem:[#allocation7 + $0x4] sm:$0x1]
    %v542 = vperm.slane %v541, 0
    %v543 = vadd.f32 %v422, %v542
    %v544 = vadd.f32 %v425, %v542
    %v545 = vmax.f32 %v539, %v543
    %v546 = vmax.f32 %v540, %v544
    %v547 = vld [vmem:[#allocation7 + $0x5] sm:$0x1]
    %v548 = vperm.slane %v547, 0
    %v549 = vadd.f32 %v468, %v548
    %v550 = vadd.f32 %v471, %v548
    %v551 = vmax.f32 %v545, %v549
    %v552 = vmax.f32 %v546, %v550
    %v553 = vld [vmem:[#allocation7 + $0x6] sm:$0x1]
    %v554 = vperm.slane %v553, 0
    %v555 = vadd.f32 %v514, %v554
    %v556 = vadd.f32 %v517, %v554
    %v557 = vmax.f32 %v551, %v555
    %v558 = vmax.f32 %v552, %v556
    %559 = vst [vmem:[#allocation8] sm:$0xff] %v557
    %560 = vst [vmem:[#allocation8 + $0x8] sm:$0xff] %v558
    // Predicated region
    $region26: #{tpu_custom_call.1} parent=1 // pred_check
      _
    $region27: #{tpu_custom_call.1} parent=1 // pred_check_branch
      %562 = sbr.rel (0) target = $region29
    $region28: #{tpu_custom_call.1} parent=1 // pred_region
      %564 = vsyncadd [#allocation4], 0
      %s565 = sshll.u32 [#allocation8], 4
      %s566 = int_to_ptr.vmem [resolvable:$true] %s565
      %s567 = sshll.u32 %s3, 4
      %s568 = int_to_ptr.hbm [resolvable:$true] %s567
      %573 = dma.vmem_to_hbm [thread:$0]  %s566, 256, %s568, [#allocation4], 128, 128, 8
    $region29: #{tpu_custom_call.1} parent=1 // pred_fallthru
      _
    // Predicated region
    $region30: #{tpu_custom_call.1} parent=1 // pred_check
      _
    $region31: #{tpu_custom_call.1} parent=1 // pred_check_branch
      %575 = sbr.rel (0) target = $region33
    $region32: #{tpu_custom_call.1} parent=1 // pred_region
      %577 = dma.done [#allocation4], 256
    $region33: #{tpu_custom_call.1} parent=1 // pred_fallthru
      _
    %578 = vsyncpa [#allocation3], 1
    %579 = vsyncpa [#allocation6], 1
    %580 = vsyncpa [#allocation4], 1

</llo_original>
